<compile_context>
chip_gen: v5e
topology: v5e:2x2
jax: 0.10.0
libtpu: 0.0.40
codegen_flags: <defaults>
</compile_context>

<pallas_src>
import functools

import jax
import jax.numpy as jnp
from jax.experimental import pallas as pl
from jax.experimental.pallas import tpu as pltpu

EPS = 1e-5  # nn.BatchNorm2d default eps


# ---------------------------------------------------------------------------
# helpers
# ---------------------------------------------------------------------------
def _round_up(x, m):
    return ((x + m - 1) // m) * m


def _pick_tile(dim, cap):
    """Largest multiple-of-128 divisor of `dim` (a 128-multiple) that is <= cap."""
    best = 128
    d = dim // 128
    for f in range(1, d + 1):
        if d % f == 0 and 128 * f <= cap:
            best = 128 * f
    return best


# ---------------------------------------------------------------------------
# Pallas kernels
# ---------------------------------------------------------------------------
def _gemm_stats_kernel(p_ref, w_ref, o_ref, sum_ref, sq_ref, acc_ref):
    """Tiled GEMM (bf16 x bf16 -> f32 acc) + per-channel partial BN stats.

    Output tile is written back in bf16; stats stay f32."""
    k = pl.program_id(2)

    @pl.when(k == 0)
    def _():
        acc_ref[...] = jnp.zeros_like(acc_ref)

    acc_ref[...] += jnp.dot(p_ref[...], w_ref[...],
                            preferred_element_type=jnp.float32)

    @pl.when(k == pl.num_programs(2) - 1)
    def _():
        acc = acc_ref[...]
        o_ref[...] = acc.astype(o_ref.dtype)
        csum = jnp.sum(acc, axis=0, keepdims=True)          # (1, TN)
        csq = jnp.sum(acc * acc, axis=0, keepdims=True)     # (1, TN)
        sum_ref[...] = jnp.broadcast_to(csum, sum_ref.shape)
        sq_ref[...] = jnp.broadcast_to(csq, sq_ref.shape)


def _bn_act_kernel(x_ref, scale_ref, shift_ref, o_ref, *, relu):
    """Elementwise BN apply (precomputed scale/shift) -> optional ReLU."""
    y = x_ref[...].astype(jnp.float32) * scale_ref[...] + shift_ref[...]
    if relu:
        y = jnp.maximum(y, 0.0)
    o_ref[...] = y.astype(o_ref.dtype)


def _bn_add_relu_kernel(x_ref, s_ref, xsc_ref, xsh_ref, ssc_ref, ssh_ref, o_ref):
    """BN(conv2) + BN(1x1 shortcut) + residual add + ReLU."""
    y = x_ref[...].astype(jnp.float32) * xsc_ref[...] + xsh_ref[...]
    s = s_ref[...].astype(jnp.float32) * ssc_ref[...] + ssh_ref[...]
    o_ref[...] = jnp.maximum(y + s, 0.0).astype(o_ref.dtype)


def _bn_add_relu_id_kernel(x_ref, s_ref, xsc_ref, xsh_ref, o_ref):
    """BN(conv2) + identity shortcut + residual add + ReLU (no shortcut FMA)."""
    y = x_ref[...].astype(jnp.float32) * xsc_ref[...] + xsh_ref[...]
    o_ref[...] = jnp.maximum(y + s_ref[...].astype(jnp.float32), 0.0
                             ).astype(o_ref.dtype)


# ---------------------------------------------------------------------------
# pallas_call wrappers
# ---------------------------------------------------------------------------
def conv_gemm_stats(patches_bf16, w_mat):
    """(M,K) @ (K,Cout) GEMM with bf16 operands; returns bf16 conv output
    (padded to 128-multiples) plus f32 per-channel mean/var over real rows."""
    M, K = patches_bf16.shape
    Kw, N = w_mat.shape
    assert Kw == K

    Mp, Kp, Np = _round_up(M, 128), _round_up(K, 128), _round_up(N, 128)

    TN = _pick_tile(Np, 512)
    TK = _pick_tile(Kp, 2048)
    TM = _pick_tile(Mp, 1024)
    gn = Np // TN
    # v7x has 2 TensorCores: when Cout fits one N tile, make sure gm >= 2.
    if gn == 1 and Mp // TM == 1 and Mp > 128:
        TM = _pick_tile(Mp, Mp // 2)
    gm, gk = Mp // TM, Kp // TK

    p = jnp.pad(patches_bf16, ((0, Mp - M), (0, Kp - K)))
    wp = jnp.pad(w_mat.astype(jnp.bfloat16), ((0, Kp - K), (0, Np - N)))

    # Double-buffered VMEM footprint (bf16 LHS/RHS/out, f32 acc + stats).
    vmem_bytes = (2 * TM * TK * 2 + 2 * TK * TN * 2 + 2 * TM * TN * 2
                  + 4 * 8 * TN * 4 + TM * TN * 4)
    vmem_limit = min(48 * 1024 * 1024, max(24 * 1024 * 1024, 2 * vmem_bytes))

    out, psum, psq = pl.pallas_call(
        _gemm_stats_kernel,
        out_shape=(
            jax.ShapeDtypeStruct((Mp, Np), jnp.bfloat16),
            jax.ShapeDtypeStruct((gm * 8, Np), jnp.float32),
            jax.ShapeDtypeStruct((gm * 8, Np), jnp.float32),
        ),
        grid=(gm, gn, gk),
        in_specs=[
            pl.BlockSpec((TM, TK), lambda i, j, k: (i, k)),
            pl.BlockSpec((TK, TN), lambda i, j, k: (k, j)),
        ],
        out_specs=[
            pl.BlockSpec((TM, TN), lambda i, j, k: (i, j)),
            pl.BlockSpec((8, TN), lambda i, j, k: (i, j)),
            pl.BlockSpec((8, TN), lambda i, j, k: (i, j)),
        ],
        scratch_shapes=[pltpu.VMEM((TM, TN), jnp.float32)],
        compiler_params=pltpu.CompilerParams(
            dimension_semantics=("parallel", "parallel", "arbitrary"),
            vmem_limit_bytes=vmem_limit,
        ),
    )(p, wp)

    # Tiny cross-M-tile stat reduction (each 8-row block holds identical rows).
    col_sum = psum.reshape(gm, 8, Np)[:, 0, :].sum(axis=0)
    col_sq = psq.reshape(gm, 8, Np)[:, 0, :].sum(axis=0)
    mean = col_sum / M                                   # padded rows are zero
    var = jnp.maximum(col_sq / M - mean * mean, 0.0)     # clamp cancellation
    return out, mean, var, (M, N, Mp, Np)


def _affine_from_stats(mean, var, gamma, beta, n_real, n_pad):
    g = jnp.zeros((n_pad,), jnp.float32).at[:n_real].set(gamma.astype(jnp.float32))
    b = jnp.zeros((n_pad,), jnp.float32).at[:n_real].set(beta.astype(jnp.float32))
    scale = g * jax.lax.rsqrt(var + EPS)
    shift = b - mean * scale
    return scale.reshape(1, n_pad), shift.reshape(1, n_pad)


def _ew_tiles(Mp, Np):
    TM = _pick_tile(Mp, 1024)
    TN = _pick_tile(Np, 512)
    if Np // TN == 1 and Mp // TM == 1 and Mp > 128:
        TM = _pick_tile(Mp, Mp // 2)   # keep both v7x cores busy
    return TM, TN


def bn_act(conv, scale, shift, *, relu, out_dtype):
    Mp, Np = conv.shape
    TM, TN = _ew_tiles(Mp, Np)
    return pl.pallas_call(
        functools.partial(_bn_act_kernel, relu=relu),
        out_shape=jax.ShapeDtypeStruct((Mp, Np), out_dtype),
        grid=(Mp // TM, Np // TN),
        in_specs=[
            pl.BlockSpec((TM, TN), lambda i, j: (i, j)),
            pl.BlockSpec((1, TN), lambda i, j: (0, j)),
            pl.BlockSpec((1, TN), lambda i, j: (0, j)),
        ],
        out_specs=pl.BlockSpec((TM, TN), lambda i, j: (i, j)),
        compiler_params=pltpu.CompilerParams(
            dimension_semantics=("parallel", "parallel")),
    )(conv, scale, shift)


def bn_add_relu(conv, short, scale, shift, s_scale=None, s_shift=None):
    Mp, Np = conv.shape
    TM, TN = _ew_tiles(Mp, Np)
    tile = pl.BlockSpec((TM, TN), lambda i, j: (i, j))
    row = pl.BlockSpec((1, TN), lambda i, j: (0, j))
    if s_scale is None:
        kernel = _bn_add_relu_id_kernel
        in_specs = [tile, tile, row, row]
        args = (conv, short, scale, shift)
    else:
        kernel = _bn_add_relu_kernel
        in_specs = [tile, tile, row, row, row, row]
        args = (conv, short, scale, shift, s_scale, s_shift)
    return pl.pallas_call(
        kernel,
        out_shape=jax.ShapeDtypeStruct((Mp, Np), jnp.float32),
        grid=(Mp // TM, Np // TN),
        in_specs=in_specs,
        out_specs=tile,
        compiler_params=pltpu.CompilerParams(
            dimension_semantics=("parallel", "parallel")),
    )(*args)


# ---------------------------------------------------------------------------
# Glue: bf16 im2col, parameter construction, block forward
# ---------------------------------------------------------------------------
def im2col(x_nhwc_bf16, ksize, stride, pad):
    N, H, W, C = x_nhwc_bf16.shape
    xp = jnp.pad(x_nhwc_bf16, ((0, 0), (pad, pad), (pad, pad), (0, 0)))
    Ho = (H + 2 * pad - ksize) // stride + 1
    Wo = (W + 2 * pad - ksize) // stride + 1
    cols = []
    for kh in range(ksize):
        for kw in range(ksize):
            cols.append(
                xp[:, kh:kh + stride * Ho:stride, kw:kw + stride * Wo:stride, :])
    patches = jnp.concatenate(cols, axis=-1)             # (N, Ho, Wo, k*k*C) bf16
    return patches.reshape(N * Ho * Wo, ksize * ksize * C), (N, Ho, Wo)


def make_params(key, indim, outdim):
    """init_layer(): conv ~ N(0, sqrt(2/(k*k*Cout))), BN weight=1, bias=0 (HWIO)."""
    k1, k2, k3 = jax.random.split(key, 3)
    std3 = (2.0 / (3 * 3 * outdim)) ** 0.5
    std1 = (2.0 / (1 * 1 * outdim)) ** 0.5
    p = {
        "W1_hwio": std3 * jax.random.normal(k1, (3, 3, indim, outdim), jnp.float32),
        "W2_hwio": std3 * jax.random.normal(k2, (3, 3, outdim, outdim), jnp.float32),
        "g1": jnp.ones((outdim,), jnp.float32),
        "b1": jnp.zeros((outdim,), jnp.float32),
        "g2": jnp.ones((outdim,), jnp.float32),
        "b2": jnp.zeros((outdim,), jnp.float32),
    }
    if indim != outdim:
        p["Ws_hwio"] = std1 * jax.random.normal(k3, (1, 1, indim, outdim), jnp.float32)
        p["gs"] = jnp.ones((outdim,), jnp.float32)
        p["bs"] = jnp.zeros((outdim,), jnp.float32)
    return p


def simple_block_forward(x_nchw, params, indim, outdim, half_res):
    if indim == outdim and half_res:
        # PyTorch's SimpleBlock would also fail (identity add with stride-2 conv).
        raise ValueError("identity shortcut incompatible with half_res=True")
    x = jnp.transpose(x_nchw, (0, 2, 3, 1))                       # NCHW -> NHWC
    x_bf16 = x.astype(jnp.bfloat16)
    stride = 2 if half_res else 1

    # out = relu(BN1(C1(x)))
    p1, (N, Ho, Wo) = im2col(x_bf16, 3, stride, 1)
    w1 = params["W1_hwio"].reshape(-1, outdim)
    c1, mean1, var1, (M, _, Mp1, Np1) = conv_gemm_stats(p1, w1)
    sc1, sh1 = _affine_from_stats(mean1, var1, params["g1"], params["b1"],
                                  outdim, Np1)
    h1 = bn_act(c1, sc1, sh1, relu=True, out_dtype=jnp.bfloat16)
    h1_nhwc = h1[:M, :outdim].reshape(N, Ho, Wo, outdim)

    # BN2(C2(out))  (normalize fused into the final add+relu kernel)
    p2, _ = im2col(h1_nhwc, 3, 1, 1)
    w2 = params["W2_hwio"].reshape(-1, outdim)
    c2, mean2, var2, (_, _, Mp2, Np2) = conv_gemm_stats(p2, w2)
    sc2, sh2 = _affine_from_stats(mean2, var2, params["g2"], params["b2"],
                                  outdim, Np2)

    if indim != outdim:
        # 1x1-conv shortcut; its BN is fused into the final kernel.
        ps, _ = im2col(x_bf16, 1, stride, 0)
        ws = params["Ws_hwio"].reshape(-1, outdim)
        cs, means, varss, (_, _, Mps, Nps) = conv_gemm_stats(ps, ws)
        assert (Mps, Nps) == (Mp2, Np2)
        s_sc, s_sh = _affine_from_stats(means, varss, params["gs"], params["bs"],
                                        outdim, Nps)
        out = bn_add_relu(c2, cs, sc2, sh2, s_sc, s_sh)
    else:
        # Identity shortcut: lane/sublane-pad bf16 x only (no f32 copy, no FMA).
        short = jnp.pad(x_bf16.reshape(M, indim),
                        ((0, Mp2 - M), (0, Np2 - indim)))
        out = bn_add_relu(c2, short, sc2, sh2)

    out = out[:M, :outdim].reshape(N, Ho, Wo, outdim)
    return jnp.transpose(out, (0, 3, 1, 2))                       # NHWC -> NCHW


# ---------------------------------------------------------------------------
# Pure-JAX reference (mirrors bf16-operand / f32-accumulate / bf16-storage math)
# ---------------------------------------------------------------------------
def _bn_train(c_f32, gamma, beta):
    mean = jnp.mean(c_f32, axis=(0, 1, 2))
    var = jnp.mean(jnp.square(c_f32 - mean), axis=(0, 1, 2))
    # mirror the kernel's bf16 storage of conv outputs (stats stay f32)
    c = c_f32.astype(jnp.bfloat16).astype(jnp.float32)
    return (c - mean) * jax.lax.rsqrt(var + EPS) * gamma + beta


def reference_forward(x_nchw, p, indim, outdim, half_res):
    x = jnp.transpose(x_nchw, (0, 2, 3, 1)).astype(jnp.float32)
    s = 2 if half_res else 1

    def conv_bf16(a, w, stride, pad):
        return jax.lax.conv_general_dilated(
            a.astype(jnp.bfloat16), w.astype(jnp.bfloat16),
            (stride, stride), ((pad, pad), (pad, pad)),
            dimension_numbers=("NHWC", "HWIO", "NHWC"),
            preferred_element_type=jnp.float32)

    h = jnp.maximum(_bn_train(conv_bf16(x, p["W1_hwio"], s, 1), p["g1"], p["b1"]), 0.0)
    h = h.astype(jnp.bfloat16).astype(jnp.float32)   # mirror bf16 h1 storage
    h = _bn_train(conv_bf16(h, p["W2_hwio"], 1, 1), p["g2"], p["b2"])
    if indim != outdim:
        sc = _bn_train(conv_bf16(x, p["Ws_hwio"], s, 0), p["gs"], p["bs"])
    else:
        sc = x.astype(jnp.bfloat16).astype(jnp.float32)   # mirror bf16 shortcut
    out = jnp.maximum(h + sc, 0.0)
    return jnp.transpose(out, (0, 3, 1, 2))


# ---------------------------------------------------------------------------
if __name__ == "__main__":
    key = jax.random.PRNGKey(0)

    fwd = jax.jit(simple_block_forward, static_argnums=(2, 3, 4))

    # Case 1: 1x1-conv shortcut, stride 2 (indim != outdim, half_res=True)
    indim, outdim, half_res = 4, 8, True
    kx, kp, kx2, kp2 = jax.random.split(key, 4)
    x = jax.random.normal(kx, (2, indim, 16, 16), jnp.float32)   # NCHW
    params = make_params(kp, indim, outdim)
    out = jax.block_until_ready(fwd(x, params, indim, outdim, half_res))
    ref = jax.block_until_ready(reference_forward(x, params, indim, outdim, half_res))
    assert out.shape == (2, outdim, 8, 8), out.shape
    assert jnp.allclose(out, ref, rtol=1e-2, atol=1e-2), (
        float(jnp.max(jnp.abs(out - ref))))

    # Case 2: identity shortcut, stride 1 (indim == outdim, half_res=False)
    indim2, outdim2, half_res2 = 8, 8, False
    x2 = jax.random.normal(kx2, (2, indim2, 16, 16), jnp.float32)
    params2 = make_params(kp2, indim2, outdim2)
    out2 = jax.block_until_ready(fwd(x2, params2, indim2, outdim2, half_res2))
    ref2 = jax.block_until_ready(
        reference_forward(x2, params2, indim2, outdim2, half_res2))
    assert out2.shape == (2, outdim2, 16, 16), out2.shape
    assert jnp.allclose(out2, ref2, rtol=1e-2, atol=1e-2), (
        float(jnp.max(jnp.abs(out2 - ref2))))

    print("KERNEL_OK")
</pallas_src>

<mosaic_0001>
module attributes {stable_mosaic.version = 11 : i64} {
  func.func @_bn_act_kernel(%arg0: i32, %arg1: i32, %arg2: memref<128x128xbf16, #tpu.memory_space<vmem>>, %arg3: memref<1x128xf32, #tpu.memory_space<vmem>>, %arg4: memref<1x128xf32, #tpu.memory_space<vmem>>, %arg5: memref<128x128xbf16, #tpu.memory_space<vmem>>) attributes {dimension_semantics = [#tpu.dimension_semantics<parallel>, #tpu.dimension_semantics<parallel>], iteration_bounds = array<i64: 1, 1>, scalar_prefetch = 0 : i64, scratch_operands = 0 : i64, tpu.core_type = #tpu.core_type<tc>, window_params = [{transform_indices = @transform_0, window_bounds = array<i64: 128, 128>}, {transform_indices = @transform_1, window_bounds = array<i64: 1, 128>}, {transform_indices = @transform_2, window_bounds = array<i64: 1, 128>}, {transform_indices = @transform_3, window_bounds = array<i64: 128, 128>}]} {
    %c0 = arith.constant 0 : index
    %c0_0 = arith.constant 0 : index
    %0 = vector.load %arg2[%c0, %c0_0] : memref<128x128xbf16, #tpu.memory_space<vmem>>, vector<128x128xbf16>
    %1 = arith.extf %0 : vector<128x128xbf16> to vector<128x128xf32>
    %c0_1 = arith.constant 0 : index
    %c0_2 = arith.constant 0 : index
    %2 = vector.load %arg3[%c0_1, %c0_2] : memref<1x128xf32, #tpu.memory_space<vmem>>, vector<1x128xf32>
    %3 = vector.broadcast %2 : vector<1x128xf32> to vector<128x128xf32>
    %4 = arith.mulf %1, %3 : vector<128x128xf32>
    %c0_3 = arith.constant 0 : index
    %c0_4 = arith.constant 0 : index
    %5 = vector.load %arg4[%c0_3, %c0_4] : memref<1x128xf32, #tpu.memory_space<vmem>>, vector<1x128xf32>
    %6 = vector.broadcast %5 : vector<1x128xf32> to vector<128x128xf32>
    %7 = arith.addf %4, %6 : vector<128x128xf32>
    %cst = arith.constant 0.000000e+00 : f32
    %8 = vector.broadcast %cst : f32 to vector<128x128xf32>
    %9 = arith.maximumf %7, %8 : vector<128x128xf32>
    %10 = arith.truncf %9 : vector<128x128xf32> to vector<128x128xbf16>
    %c0_5 = arith.constant 0 : index
    %c0_6 = arith.constant 0 : index
    %11 = vector.load %arg5[%c0_5, %c0_6] : memref<128x128xbf16, #tpu.memory_space<vmem>>, vector<128x128xbf16>
    tpu.vector_store %arg5[%c0_5, %c0_6], %10 {strides = array<i32>} : memref<128x128xbf16, #tpu.memory_space<vmem>>, vector<128x128xbf16>,
    return
  }
  func.func @transform_0(%arg0: i32, %arg1: i32) -> (i32, i32) {
    %c0_i32 = arith.constant 0 : i32
    return %arg0, %arg1 : i32, i32
  }
  func.func @transform_1(%arg0: i32, %arg1: i32) -> (i32, i32) {
    %c0_i32 = arith.constant 0 : i32
    %c0_i32_0 = arith.constant 0 : i32
    return %c0_i32, %arg1 : i32, i32
  }
  func.func @transform_2(%arg0: i32, %arg1: i32) -> (i32, i32) {
    %c0_i32 = arith.constant 0 : i32
    %c0_i32_0 = arith.constant 0 : i32
    return %c0_i32, %arg1 : i32, i32
  }
  func.func @transform_3(%arg0: i32, %arg1: i32) -> (i32, i32) {
    %c0_i32 = arith.constant 0 : i32
    return %arg0, %arg1 : i32, i32
  }
}

module attributes {stable_mosaic.version = 11 : i64} {
  func.func @_gemm_stats_kernel(%arg0: i32, %arg1: i32, %arg2: i32, %arg3: memref<128x128xbf16, #tpu.memory_space<vmem>>, %arg4: memref<128x128xbf16, #tpu.memory_space<vmem>>, %arg5: memref<128x128xbf16, #tpu.memory_space<vmem>>, %arg6: memref<8x128xf32, #tpu.memory_space<vmem>>, %arg7: memref<8x128xf32, #tpu.memory_space<vmem>>, %arg8: memref<128x128xf32, #tpu.memory_space<vmem>>) attributes {dimension_semantics = [#tpu.dimension_semantics<parallel>, #tpu.dimension_semantics<parallel>, #tpu.dimension_semantics<arbitrary>], iteration_bounds = array<i64: 1, 1, 1>, scalar_prefetch = 0 : i64, scratch_operands = 1 : i64, tpu.core_type = #tpu.core_type<tc>, window_params = [{transform_indices = @transform_0, window_bounds = array<i64: 128, 128>}, {transform_indices = @transform_1, window_bounds = array<i64: 128, 128>}, {transform_indices = @transform_2, window_bounds = array<i64: 128, 128>}, {transform_indices = @transform_3, window_bounds = array<i64: 8, 128>}, {transform_indices = @transform_4, window_bounds = array<i64: 8, 128>}]} {
    %c0_i32 = arith.constant 0 : i32
    %0 = arith.cmpi eq, %arg2, %c0_i32 : i32
    %1 = arith.extui %0 : i1 to i32
    %c0_i32_0 = arith.constant 0 : i32
    %2 = arith.cmpi ne, %1, %c0_i32_0 : i32
    scf.if %2 {
      %cst_10 = arith.constant 0.000000e+00 : f32
      %12 = vector.broadcast %cst_10 : f32 to vector<128x128xf32>
      %c0_11 = arith.constant 0 : index
      %c0_12 = arith.constant 0 : index
      %13 = vector.load %arg8[%c0_11, %c0_12] : memref<128x128xf32, #tpu.memory_space<vmem>>, vector<128x128xf32>
      tpu.vector_store %arg8[%c0_11, %c0_12], %12 {strides = array<i32>} : memref<128x128xf32, #tpu.memory_space<vmem>>, vector<128x128xf32>,
    } else {
    }
    %c0 = arith.constant 0 : index
    %c0_1 = arith.constant 0 : index
    %3 = vector.load %arg8[%c0, %c0_1] : memref<128x128xf32, #tpu.memory_space<vmem>>, vector<128x128xf32>
    %c0_2 = arith.constant 0 : index
    %c0_3 = arith.constant 0 : index
    %4 = vector.load %arg3[%c0_2, %c0_3] : memref<128x128xbf16, #tpu.memory_space<vmem>>, vector<128x128xbf16>
    %c0_4 = arith.constant 0 : index
    %c0_5 = arith.constant 0 : index
    %5 = vector.load %arg4[%c0_4, %c0_5] : memref<128x128xbf16, #tpu.memory_space<vmem>>, vector<128x128xbf16>
    %cst = arith.constant dense<0.000000e+00> : vector<128x128xf32>
    %6 = tpu.matmul %4, %5, %cst {dimension_numbers = #tpu.dot_dimension_numbers<[1], [0], [0], [1], [0, 0, 1, 1], [], []>} : vector<128x128xbf16>, vector<128x128xbf16>, vector<128x128xf32> -> vector<128x128xf32>
    %7 = arith.addf %3, %6 : vector<128x128xf32>
    %c0_6 = arith.constant 0 : index
    %c0_7 = arith.constant 0 : index
    %8 = vector.load %arg8[%c0_6, %c0_7] : memref<128x128xf32, #tpu.memory_space<vmem>>, vector<128x128xf32>
    tpu.vector_store %arg8[%c0_6, %c0_7], %7 {strides = array<i32>} : memref<128x128xf32, #tpu.memory_space<vmem>>, vector<128x128xf32>,
    %c0_i32_8 = arith.constant 0 : i32
    %9 = arith.cmpi eq, %arg2, %c0_i32_8 : i32
    %10 = arith.extui %9 : i1 to i32
    %c0_i32_9 = arith.constant 0 : i32
    %11 = arith.cmpi ne, %10, %c0_i32_9 : i32
    scf.if %11 {
      %c0_10 = arith.constant 0 : index
      %c0_11 = arith.constant 0 : index
      %12 = vector.load %arg8[%c0_10, %c0_11] : memref<128x128xf32, #tpu.memory_space<vmem>>, vector<128x128xf32>
      %13 = arith.truncf %12 : vector<128x128xf32> to vector<128x128xbf16>
      %c0_12 = arith.constant 0 : index
      %c0_13 = arith.constant 0 : index
      %14 = vector.load %arg5[%c0_12, %c0_13] : memref<128x128xbf16, #tpu.memory_space<vmem>>, vector<128x128xbf16>
      tpu.vector_store %arg5[%c0_12, %c0_13], %13 {strides = array<i32>} : memref<128x128xbf16, #tpu.memory_space<vmem>>, vector<128x128xbf16>,
      %cst_14 = arith.constant dense<0.000000e+00> : vector<128xf32>
      %15 = vector.multi_reduction <add>, %12, %cst_14 [0] : vector<128x128xf32> to vector<128xf32>
      %16 = vector.shape_cast %15 : vector<128xf32> to vector<1x128xf32>
      %17 = arith.mulf %12, %12 : vector<128x128xf32>
      %cst_15 = arith.constant dense<0.000000e+00> : vector<128xf32>
      %18 = vector.multi_reduction <add>, %17, %cst_15 [0] : vector<128x128xf32> to vector<128xf32>
      %19 = vector.shape_cast %18 : vector<128xf32> to vector<1x128xf32>
      %20 = vector.shape_cast %16 : vector<1x128xf32> to vector<1x128xf32>
      %21 = vector.broadcast %20 : vector<1x128xf32> to vector<8x128xf32>
      %c0_16 = arith.constant 0 : index
      %c0_17 = arith.constant 0 : index
      %22 = vector.load %arg6[%c0_16, %c0_17] : memref<8x128xf32, #tpu.memory_space<vmem>>, vector<8x128xf32>
      tpu.vector_store %arg6[%c0_16, %c0_17], %21 {strides = array<i32>} : memref<8x128xf32, #tpu.memory_space<vmem>>, vector<8x128xf32>,
      %23 = vector.shape_cast %19 : vector<1x128xf32> to vector<1x128xf32>
      %24 = vector.broadcast %23 : vector<1x128xf32> to vector<8x128xf32>
      %c0_18 = arith.constant 0 : index
      %c0_19 = arith.constant 0 : index
      %25 = vector.load %arg7[%c0_18, %c0_19] : memref<8x128xf32, #tpu.memory_space<vmem>>, vector<8x128xf32>
      tpu.vector_store %arg7[%c0_18, %c0_19], %24 {strides = array<i32>} : memref<8x128xf32, #tpu.memory_space<vmem>>, vector<8x128xf32>,
    } else {
    }
    return
  }
  func.func @transform_0(%arg0: i32, %arg1: i32, %arg2: i32) -> (i32, i32) {
    %c0_i32 = arith.constant 0 : i32
    return %arg0, %arg2 : i32, i32
  }
  func.func @transform_1(%arg0: i32, %arg1: i32, %arg2: i32) -> (i32, i32) {
    %c0_i32 = arith.constant 0 : i32
    return %arg2, %arg1 : i32, i32
  }
  func.func @transform_2(%arg0: i32, %arg1: i32, %arg2: i32) -> (i32, i32) {
    %c0_i32 = arith.constant 0 : i32
    return %arg0, %arg1 : i32, i32
  }
  func.func @transform_3(%arg0: i32, %arg1: i32, %arg2: i32) -> (i32, i32) {
    %c0_i32 = arith.constant 0 : i32
    return %arg0, %arg1 : i32, i32
  }
  func.func @transform_4(%arg0: i32, %arg1: i32, %arg2: i32) -> (i32, i32) {
    %c0_i32 = arith.constant 0 : i32
    return %arg0, %arg1 : i32, i32
  }
}

module attributes {stable_mosaic.version = 11 : i64} {
  func.func @_bn_add_relu_kernel(%arg0: i32, %arg1: i32, %arg2: memref<128x128xbf16, #tpu.memory_space<vmem>>, %arg3: memref<128x128xbf16, #tpu.memory_space<vmem>>, %arg4: memref<1x128xf32, #tpu.memory_space<vmem>>, %arg5: memref<1x128xf32, #tpu.memory_space<vmem>>, %arg6: memref<1x128xf32, #tpu.memory_space<vmem>>, %arg7: memref<1x128xf32, #tpu.memory_space<vmem>>, %arg8: memref<128x128xf32, #tpu.memory_space<vmem>>) attributes {dimension_semantics = [#tpu.dimension_semantics<parallel>, #tpu.dimension_semantics<parallel>], iteration_bounds = array<i64: 1, 1>, scalar_prefetch = 0 : i64, scratch_operands = 0 : i64, tpu.core_type = #tpu.core_type<tc>, window_params = [{transform_indices = @transform_0, window_bounds = array<i64: 128, 128>}, {transform_indices = @transform_1, window_bounds = array<i64: 128, 128>}, {transform_indices = @transform_2, window_bounds = array<i64: 1, 128>}, {transform_indices = @transform_3, window_bounds = array<i64: 1, 128>}, {transform_indices = @transform_4, window_bounds = array<i64: 1, 128>}, {transform_indices = @transform_5, window_bounds = array<i64: 1, 128>}, {transform_indices = @transform_6, window_bounds = array<i64: 128, 128>}]} {
    %c0 = arith.constant 0 : index
    %c0_0 = arith.constant 0 : index
    %0 = vector.load %arg2[%c0, %c0_0] : memref<128x128xbf16, #tpu.memory_space<vmem>>, vector<128x128xbf16>
    %1 = arith.extf %0 : vector<128x128xbf16> to vector<128x128xf32>
    %c0_1 = arith.constant 0 : index
    %c0_2 = arith.constant 0 : index
    %2 = vector.load %arg4[%c0_1, %c0_2] : memref<1x128xf32, #tpu.memory_space<vmem>>, vector<1x128xf32>
    %3 = vector.broadcast %2 : vector<1x128xf32> to vector<128x128xf32>
    %4 = arith.mulf %1, %3 : vector<128x128xf32>
    %c0_3 = arith.constant 0 : index
    %c0_4 = arith.constant 0 : index
    %5 = vector.load %arg5[%c0_3, %c0_4] : memref<1x128xf32, #tpu.memory_space<vmem>>, vector<1x128xf32>
    %6 = vector.broadcast %5 : vector<1x128xf32> to vector<128x128xf32>
    %7 = arith.addf %4, %6 : vector<128x128xf32>
    %c0_5 = arith.constant 0 : index
    %c0_6 = arith.constant 0 : index
    %8 = vector.load %arg3[%c0_5, %c0_6] : memref<128x128xbf16, #tpu.memory_space<vmem>>, vector<128x128xbf16>
    %9 = arith.extf %8 : vector<128x128xbf16> to vector<128x128xf32>
    %c0_7 = arith.constant 0 : index
    %c0_8 = arith.constant 0 : index
    %10 = vector.load %arg6[%c0_7, %c0_8] : memref<1x128xf32, #tpu.memory_space<vmem>>, vector<1x128xf32>
    %11 = vector.broadcast %10 : vector<1x128xf32> to vector<128x128xf32>
    %12 = arith.mulf %9, %11 : vector<128x128xf32>
    %c0_9 = arith.constant 0 : index
    %c0_10 = arith.constant 0 : index
    %13 = vector.load %arg7[%c0_9, %c0_10] : memref<1x128xf32, #tpu.memory_space<vmem>>, vector<1x128xf32>
    %14 = vector.broadcast %13 : vector<1x128xf32> to vector<128x128xf32>
    %15 = arith.addf %12, %14 : vector<128x128xf32>
    %16 = arith.addf %7, %15 : vector<128x128xf32>
    %cst = arith.constant 0.000000e+00 : f32
    %17 = vector.broadcast %cst : f32 to vector<128x128xf32>
    %18 = arith.maximumf %16, %17 : vector<128x128xf32>
    %c0_11 = arith.constant 0 : index
    %c0_12 = arith.constant 0 : index
    %19 = vector.load %arg8[%c0_11, %c0_12] : memref<128x128xf32, #tpu.memory_space<vmem>>, vector<128x128xf32>
    tpu.vector_store %arg8[%c0_11, %c0_12], %18 {strides = array<i32>} : memref<128x128xf32, #tpu.memory_space<vmem>>, vector<128x128xf32>,
    return
  }
  func.func @transform_0(%arg0: i32, %arg1: i32) -> (i32, i32) {
    %c0_i32 = arith.constant 0 : i32
    return %arg0, %arg1 : i32, i32
  }
  func.func @transform_1(%arg0: i32, %arg1: i32) -> (i32, i32) {
    %c0_i32 = arith.constant 0 : i32
    return %arg0, %arg1 : i32, i32
  }
  func.func @transform_2(%arg0: i32, %arg1: i32) -> (i32, i32) {
    %c0_i32 = arith.constant 0 : i32
    %c0_i32_0 = arith.constant 0 : i32
    return %c0_i32, %arg1 : i32, i32
  }
  func.func @transform_3(%arg0: i32, %arg1: i32) -> (i32, i32) {
    %c0_i32 = arith.constant 0 : i32
    %c0_i32_0 = arith.constant 0 : i32
    return %c0_i32, %arg1 : i32, i32
  }
  func.func @transform_4(%arg0: i32, %arg1: i32) -> (i32, i32) {
    %c0_i32 = arith.constant 0 : i32
    %c0_i32_0 = arith.constant 0 : i32
    return %c0_i32, %arg1 : i32, i32
  }
  func.func @transform_5(%arg0: i32, %arg1: i32) -> (i32, i32) {
    %c0_i32 = arith.constant 0 : i32
    %c0_i32_0 = arith.constant 0 : i32
    return %c0_i32, %arg1 : i32, i32
  }
  func.func @transform_6(%arg0: i32, %arg1: i32) -> (i32, i32) {
    %c0_i32 = arith.constant 0 : i32
    return %arg0, %arg1 : i32, i32
  }
}

</mosaic_0001>

<llo_original>
// kernel: simple_block_forward.6
$region0: #{simple_block_forward.6}
  #allocation0 [shape = 'u32[]', space=smem, size = 0x4, offset = 0x4, fixed_abs, tag = 'smem constant byte address 0x4 - core index']
  #allocation1 [shape = 'u32[72,128]{1,0:T(1,128)}', space=vmem, size = 0x9000, scoped, tag = 'internal scratch']
  %s0 = inlined_call_operand.vmem [shape: bf16[128,128], index: 0, kind: input, shape index: {}]
  %s1 = inlined_call_operand.vmem [shape: f32[1,128], index: 1, kind: input, shape index: {}]
  %s2 = inlined_call_operand.vmem [shape: f32[1,128], index: 2, kind: input, shape index: {}]
  %s3 = inlined_call_operand.vmem [shape: bf16[128,128], index: 3, kind: output, shape index: {}]
  %s4 = sld [smem:[#allocation0]]
  $region22: #{simple_block_forward.6} parent=0
    _
  %s6 = ssub.s32 1, %s4
  %s7 = scalar_select 0, %s6, %s4
  // Predicated region
  $region2: #{simple_block_forward.6} parent=0 // pred_check
    _
  $region3: #{simple_block_forward.6} parent=0 // pred_check_branch
    %9 = sbr.rel (0) target = $region5
  $region4: #{simple_block_forward.6} parent=0 // pred_region
    _
  $region5: #{simple_block_forward.6} parent=0 // pred_fallthru
    _
  // Predicated region
  $region6: #{simple_block_forward.6} parent=0 // pred_check
    _
  $region7: #{simple_block_forward.6} parent=0 // pred_check_branch
    %11 = sbr.rel (0) target = $region9
  $region8: #{simple_block_forward.6} parent=0 // pred_region
    _
  $region9: #{simple_block_forward.6} parent=0 // pred_fallthru
    _
  // Predicated region
  $region10: #{simple_block_forward.6} parent=0 // pred_check
    _
  $region11: #{simple_block_forward.6} parent=0 // pred_check_branch
    %13 = sbr.rel (0) target = $region13
  $region12: #{simple_block_forward.6} parent=0 // pred_region
    _
  $region13: #{simple_block_forward.6} parent=0 // pred_fallthru
    _
  %v14 = vld [vmem:[%s0] sm:$0xf]
  %v15 = vld [vmem:[%s0 + $0x4] sm:$0xf]
  %v16 = vld [vmem:[%s0 + $0x8] sm:$0xf]
  %v17 = vld [vmem:[%s0 + $0xc] sm:$0xf]
  %v18 = vld [vmem:[%s0 + $0x10] sm:$0xf]
  %v19 = vld [vmem:[%s0 + $0x14] sm:$0xf]
  %v20 = vld [vmem:[%s0 + $0x18] sm:$0xf]
  %v21 = vld [vmem:[%s0 + $0x1c] sm:$0xf]
  %v22 = vld [vmem:[%s0 + $0x20] sm:$0xf]
  %v23 = vld [vmem:[%s0 + $0x24] sm:$0xf]
  %v24 = vld [vmem:[%s0 + $0x28] sm:$0xf]
  %v25 = vld [vmem:[%s0 + $0x2c] sm:$0xf]
  %v26 = vld [vmem:[%s0 + $0x30] sm:$0xf]
  %v27 = vld [vmem:[%s0 + $0x34] sm:$0xf]
  %v28 = vld [vmem:[%s0 + $0x38] sm:$0xf]
  %v29 = vld [vmem:[%s0 + $0x3c] sm:$0xf]
  %v30 = vunpack.c.l.bf16 %v14
  %v31 = vunpack.c.l.bf16 %v15
  %v32 = vunpack.c.l.bf16 %v16
  %v33 = vunpack.c.l.bf16 %v17
  %v34 = vunpack.c.l.bf16 %v18
  %v35 = vunpack.c.l.bf16 %v19
  %v36 = vunpack.c.l.bf16 %v20
  %v37 = vunpack.c.l.bf16 %v21
  %v38 = vunpack.c.l.bf16 %v22
  %v39 = vunpack.c.l.bf16 %v23
  %v40 = vunpack.c.l.bf16 %v24
  %v41 = vunpack.c.l.bf16 %v25
  %v42 = vunpack.c.l.bf16 %v26
  %v43 = vunpack.c.l.bf16 %v27
  %v44 = vunpack.c.l.bf16 %v28
  %v45 = vunpack.c.l.bf16 %v29
  %v46 = vld [vmem:[%s1] sm:$0x1]
  %v48 = vperm.slane %v46, 0
  %v50 = vmul.f32 %v30, %v48
  %v51 = vmul.f32 %v31, %v48
  %v52 = vmul.f32 %v32, %v48
  %v53 = vmul.f32 %v33, %v48
  %v54 = vmul.f32 %v34, %v48
  %v55 = vmul.f32 %v35, %v48
  %v56 = vmul.f32 %v36, %v48
  %v57 = vmul.f32 %v37, %v48
  %v58 = vmul.f32 %v38, %v48
  %v59 = vmul.f32 %v39, %v48
  %v60 = vmul.f32 %v40, %v48
  %v61 = vmul.f32 %v41, %v48
  %v62 = vmul.f32 %v42, %v48
  %v63 = vmul.f32 %v43, %v48
  %v64 = vmul.f32 %v44, %v48
  %v65 = vmul.f32 %v45, %v48
  %v66 = vld [vmem:[%s2] sm:$0x1]
  %v68 = vperm.slane %v66, 0
  %v70 = vadd.f32 %v50, %v68
  %v71 = vadd.f32 %v51, %v68
  %v72 = vadd.f32 %v52, %v68
  %v73 = vadd.f32 %v53, %v68
  %v74 = vadd.f32 %v54, %v68
  %v75 = vadd.f32 %v55, %v68
  %v76 = vadd.f32 %v56, %v68
  %v77 = vadd.f32 %v57, %v68
  %v78 = vadd.f32 %v58, %v68
  %v79 = vadd.f32 %v59, %v68
  %v80 = vadd.f32 %v60, %v68
  %v81 = vadd.f32 %v61, %v68
  %v82 = vadd.f32 %v62, %v68
  %v83 = vadd.f32 %v63, %v68
  %v84 = vadd.f32 %v64, %v68
  %v85 = vadd.f32 %v65, %v68
  %v86 = vmax.f32 %v70, 0.0
  %v87 = vmax.f32 %v71, 0.0
  %v88 = vmax.f32 %v72, 0.0
  %v89 = vmax.f32 %v73, 0.0
  %v90 = vmax.f32 %v74, 0.0
  %v91 = vmax.f32 %v75, 0.0
  %v92 = vmax.f32 %v76, 0.0
  %v93 = vmax.f32 %v77, 0.0
  %v94 = vmax.f32 %v78, 0.0
  %v95 = vmax.f32 %v79, 0.0
  %v96 = vmax.f32 %v80, 0.0
  %v97 = vmax.f32 %v81, 0.0
  %v98 = vmax.f32 %v82, 0.0
  %v99 = vmax.f32 %v83, 0.0
  %v100 = vmax.f32 %v84, 0.0
  %v101 = vmax.f32 %v85, 0.0
  %v102 = vpack.c.bf16 %v86, %v86
  %v103 = vpack.c.bf16 %v87, %v87
  %v104 = vpack.c.bf16 %v88, %v88
  %v105 = vpack.c.bf16 %v89, %v89
  %v106 = vpack.c.bf16 %v90, %v90
  %v107 = vpack.c.bf16 %v91, %v91
  %v108 = vpack.c.bf16 %v92, %v92
  %v109 = vpack.c.bf16 %v93, %v93
  %v110 = vpack.c.bf16 %v94, %v94
  %v111 = vpack.c.bf16 %v95, %v95
  %v112 = vpack.c.bf16 %v96, %v96
  %v113 = vpack.c.bf16 %v97, %v97
  %v114 = vpack.c.bf16 %v98, %v98
  %v115 = vpack.c.bf16 %v99, %v99
  %v116 = vpack.c.bf16 %v100, %v100
  %v117 = vpack.c.bf16 %v101, %v101
  %118 = vst [vmem:[%s3] sm:$0xf] %v102
  %119 = vst [vmem:[%s3 + $0x4] sm:$0xf] %v103
  %120 = vst [vmem:[%s3 + $0x8] sm:$0xf] %v104
  %121 = vst [vmem:[%s3 + $0xc] sm:$0xf] %v105
  %122 = vst [vmem:[%s3 + $0x10] sm:$0xf] %v106
  %123 = vst [vmem:[%s3 + $0x14] sm:$0xf] %v107
  %124 = vst [vmem:[%s3 + $0x18] sm:$0xf] %v108
  %125 = vst [vmem:[%s3 + $0x1c] sm:$0xf] %v109
  %126 = vst [vmem:[%s3 + $0x20] sm:$0xf] %v110
  %127 = vst [vmem:[%s3 + $0x24] sm:$0xf] %v111
  %128 = vst [vmem:[%s3 + $0x28] sm:$0xf] %v112
  %129 = vst [vmem:[%s3 + $0x2c] sm:$0xf] %v113
  %130 = vst [vmem:[%s3 + $0x30] sm:$0xf] %v114
  %131 = vst [vmem:[%s3 + $0x34] sm:$0xf] %v115
  %132 = vst [vmem:[%s3 + $0x38] sm:$0xf] %v116
  %133 = vst [vmem:[%s3 + $0x3c] sm:$0xf] %v117
  // Predicated region
  $region14: #{simple_block_forward.6} parent=0 // pred_check
    _
  $region15: #{simple_block_forward.6} parent=0 // pred_check_branch
    %135 = sbr.rel (0) target = $region17
  $region16: #{simple_block_forward.6} parent=0 // pred_region
    _
  $region17: #{simple_block_forward.6} parent=0 // pred_fallthru
    _
  // Predicated region
  $region18: #{simple_block_forward.6} parent=0 // pred_check
    _
  $region19: #{simple_block_forward.6} parent=0 // pred_check_branch
    %137 = sbr.rel (0) target = $region21
  $region20: #{simple_block_forward.6} parent=0 // pred_region
    _
  $region21: #{simple_block_forward.6} parent=0 // pred_fallthru
    _

// kernel: simple_block_forward.5
$region0: #{simple_block_forward.5}
  #allocation0 [shape = 'u32[]', space=smem, size = 0x4, offset = 0x4, fixed_abs, tag = 'smem constant byte address 0x4 - core index']
  #allocation1 [shape = 'u32[72,128]{1,0:T(1,128)}', space=vmem, size = 0x9000, scoped, tag = 'internal scratch']
  #allocation2 [shape = 'f32[128,128]{1,0:T(8,128)}', space=vmem, size = 0x10000, scoped, tag = 'scratch operand']
  %s0 = inlined_call_operand.vmem [shape: bf16[128,128], index: 0, kind: input, shape index: {}]
  %s1 = inlined_call_operand.vmem [shape: bf16[128,128], index: 1, kind: input, shape index: {}]
  %s2 = inlined_call_operand.vmem [shape: bf16[128,128], index: 2, kind: output, shape index: {0}]
  %s3 = inlined_call_operand.vmem [shape: f32[8,128], index: 3, kind: output, shape index: {1}]
  %s4 = inlined_call_operand.vmem [shape: f32[8,128], index: 4, kind: output, shape index: {2}]
  %5 = xla_tuple %s2, %s3, %s4
  %s6 = sld [smem:[#allocation0]]
  $region42: #{simple_block_forward.5} parent=0
    _
  %s8 = ssub.s32 1, %s6
  %s9 = scalar_select 0, %s8, %s6
  // Predicated region
  $region2: #{simple_block_forward.5} parent=0 // pred_check
    _
  $region3: #{simple_block_forward.5} parent=0 // pred_check_branch
    %11 = sbr.rel (0) target = $region5
  $region4: #{simple_block_forward.5} parent=0 // pred_region
    _
  $region5: #{simple_block_forward.5} parent=0 // pred_fallthru
    _
  // Predicated region
  $region6: #{simple_block_forward.5} parent=0 // pred_check
    _
  $region7: #{simple_block_forward.5} parent=0 // pred_check_branch
    %13 = sbr.rel (0) target = $region9
  $region8: #{simple_block_forward.5} parent=0 // pred_region
    _
  $region9: #{simple_block_forward.5} parent=0 // pred_fallthru
    _
  %p14 = scmp.eq.s32.totalorder 0, 0
  // Predicated region
  $region10: #{simple_block_forward.5} parent=0 // pred_check
    %p15 = pneg %p14
  $region11: #{simple_block_forward.5} parent=0 // pred_check_branch
    %17 = sbr.rel (%p15) target = $region13
  $region12: #{simple_block_forward.5} parent=0 // pred_region
    %18 = vst [vmem:[#allocation2] sm:$0xff] 0.0
    %19 = vst [vmem:[#allocation2 + $0x8] sm:$0xff] 0.0
    %20 = vst [vmem:[#allocation2 + $0x10] sm:$0xff] 0.0
    %21 = vst [vmem:[#allocation2 + $0x18] sm:$0xff] 0.0
    %22 = vst [vmem:[#allocation2 + $0x20] sm:$0xff] 0.0
    %23 = vst [vmem:[#allocation2 + $0x28] sm:$0xff] 0.0
    %24 = vst [vmem:[#allocation2 + $0x30] sm:$0xff] 0.0
    %25 = vst [vmem:[#allocation2 + $0x38] sm:$0xff] 0.0
    %26 = vst [vmem:[#allocation2 + $0x40] sm:$0xff] 0.0
    %27 = vst [vmem:[#allocation2 + $0x48] sm:$0xff] 0.0
    %28 = vst [vmem:[#allocation2 + $0x50] sm:$0xff] 0.0
    %29 = vst [vmem:[#allocation2 + $0x58] sm:$0xff] 0.0
    %30 = vst [vmem:[#allocation2 + $0x60] sm:$0xff] 0.0
    %31 = vst [vmem:[#allocation2 + $0x68] sm:$0xff] 0.0
    %32 = vst [vmem:[#allocation2 + $0x70] sm:$0xff] 0.0
    %33 = vst [vmem:[#allocation2 + $0x78] sm:$0xff] 0.0
  $region13: #{simple_block_forward.5} parent=0 // pred_fallthru
    _
  %v34 = vld [vmem:[#allocation2] sm:$0xff]
  %v35 = vld [vmem:[#allocation2 + $0x8] sm:$0xff]
  %v36 = vld [vmem:[#allocation2 + $0x10] sm:$0xff]
  %v37 = vld [vmem:[#allocation2 + $0x18] sm:$0xff]
  %v38 = vld [vmem:[#allocation2 + $0x20] sm:$0xff]
  %v39 = vld [vmem:[#allocation2 + $0x28] sm:$0xff]
  %v40 = vld [vmem:[#allocation2 + $0x30] sm:$0xff]
  %v41 = vld [vmem:[#allocation2 + $0x38] sm:$0xff]
  %v42 = vld [vmem:[#allocation2 + $0x40] sm:$0xff]
  %v43 = vld [vmem:[#allocation2 + $0x48] sm:$0xff]
  %v44 = vld [vmem:[#allocation2 + $0x50] sm:$0xff]
  %v45 = vld [vmem:[#allocation2 + $0x58] sm:$0xff]
  %v46 = vld [vmem:[#allocation2 + $0x60] sm:$0xff]
  %v47 = vld [vmem:[#allocation2 + $0x68] sm:$0xff]
  %v48 = vld [vmem:[#allocation2 + $0x70] sm:$0xff]
  %v49 = vld [vmem:[#allocation2 + $0x78] sm:$0xff]
  %v50 = vld [vmem:[%s0] sm:$0xf]
  %v51 = vld [vmem:[%s0 + $0x4] sm:$0xf]
  %v52 = vld [vmem:[%s0 + $0x8] sm:$0xf]
  %v53 = vld [vmem:[%s0 + $0xc] sm:$0xf]
  %v54 = vld [vmem:[%s0 + $0x10] sm:$0xf]
  %v55 = vld [vmem:[%s0 + $0x14] sm:$0xf]
  %v56 = vld [vmem:[%s0 + $0x18] sm:$0xf]
  %v57 = vld [vmem:[%s0 + $0x1c] sm:$0xf]
  %v58 = vld [vmem:[%s0 + $0x20] sm:$0xf]
  %v59 = vld [vmem:[%s0 + $0x24] sm:$0xf]
  %v60 = vld [vmem:[%s0 + $0x28] sm:$0xf]
  %v61 = vld [vmem:[%s0 + $0x2c] sm:$0xf]
  %v62 = vld [vmem:[%s0 + $0x30] sm:$0xf]
  %v63 = vld [vmem:[%s0 + $0x34] sm:$0xf]
  %v64 = vld [vmem:[%s0 + $0x38] sm:$0xf]
  %v65 = vld [vmem:[%s0 + $0x3c] sm:$0xf]
  %v66 = vld [vmem:[%s1] sm:$0xf]
  %v67 = vld [vmem:[%s1 + $0x4] sm:$0xf]
  %v68 = vld [vmem:[%s1 + $0x8] sm:$0xf]
  %v69 = vld [vmem:[%s1 + $0xc] sm:$0xf]
  %v70 = vld [vmem:[%s1 + $0x10] sm:$0xf]
  %v71 = vld [vmem:[%s1 + $0x14] sm:$0xf]
  %v72 = vld [vmem:[%s1 + $0x18] sm:$0xf]
  %v73 = vld [vmem:[%s1 + $0x1c] sm:$0xf]
  %v74 = vld [vmem:[%s1 + $0x20] sm:$0xf]
  %v75 = vld [vmem:[%s1 + $0x24] sm:$0xf]
  %v76 = vld [vmem:[%s1 + $0x28] sm:$0xf]
  %v77 = vld [vmem:[%s1 + $0x2c] sm:$0xf]
  %v78 = vld [vmem:[%s1 + $0x30] sm:$0xf]
  %v79 = vld [vmem:[%s1 + $0x34] sm:$0xf]
  %v80 = vld [vmem:[%s1 + $0x38] sm:$0xf]
  %v81 = vld [vmem:[%s1 + $0x3c] sm:$0xf]
  %v98 = vunpack.c.l.b16 %v50
  %v99 = vunpack.c.l.b16 %v51
  %v100 = vunpack.c.l.b16 %v52
  %v101 = vunpack.c.l.b16 %v53
  %v102 = vunpack.c.l.b16 %v54
  %v103 = vunpack.c.l.b16 %v55
  %v104 = vunpack.c.l.b16 %v56
  %v105 = vunpack.c.l.b16 %v57
  %v106 = vunpack.c.l.b16 %v58
  %v107 = vunpack.c.l.b16 %v59
  %v108 = vunpack.c.l.b16 %v60
  %v109 = vunpack.c.l.b16 %v61
  %v110 = vunpack.c.l.b16 %v62
  %v111 = vunpack.c.l.b16 %v63
  %v112 = vunpack.c.l.b16 %v64
  %v113 = vunpack.c.l.b16 %v65
  %v114 = vpack.c.b16 %v99, %v98
  %v115 = vpack.c.b16 %v101, %v100
  %v116 = vpack.c.b16 %v103, %v102
  %v117 = vpack.c.b16 %v105, %v104
  %v118 = vpack.c.b16 %v107, %v106
  %v119 = vpack.c.b16 %v109, %v108
  %v120 = vpack.c.b16 %v111, %v110
  %v121 = vpack.c.b16 %v113, %v112
  %v146 = vunpack.c.l.b16 %v66
  %v147 = vunpack.c.l.b16 %v67
  %v148 = vunpack.c.l.b16 %v68
  %v149 = vunpack.c.l.b16 %v69
  %v150 = vunpack.c.l.b16 %v70
  %v151 = vunpack.c.l.b16 %v71
  %v152 = vunpack.c.l.b16 %v72
  %v153 = vunpack.c.l.b16 %v73
  %v154 = vunpack.c.l.b16 %v74
  %v155 = vunpack.c.l.b16 %v75
  %v156 = vunpack.c.l.b16 %v76
  %v157 = vunpack.c.l.b16 %v77
  %v158 = vunpack.c.l.b16 %v78
  %v159 = vunpack.c.l.b16 %v79
  %v160 = vunpack.c.l.b16 %v80
  %v161 = vunpack.c.l.b16 %v81
  %v162 = vpack.c.b16 %v147, %v146
  %v163 = vpack.c.b16 %v149, %v148
  %v164 = vpack.c.b16 %v151, %v150
  %v165 = vpack.c.b16 %v153, %v152
  %v166 = vpack.c.b16 %v155, %v154
  %v167 = vpack.c.b16 %v157, %v156
  %v168 = vpack.c.b16 %v159, %v158
  %v169 = vpack.c.b16 %v161, %v160
  %178 = vmatpush.bf16.msra.mxu0 %v169
  %179 = vmatpush.bf16.msra.mxu0 %v168
  %180 = vmatpush.bf16.msra.mxu0 %v167
  %181 = vmatpush.bf16.msra.mxu0 %v166
  %182 = vmatpush.bf16.msra.mxu0 %v165
  %183 = vmatpush.bf16.msra.mxu0 %v164
  %184 = vmatpush.bf16.msra.mxu0 %v163
  %185 = vmatpush.bf16.msra.mxu0 %v162
  %186 = vmatmul.bf16.gmra.mxu0 %v114
  %v187 = vpop.f32.mrf.mxu0
  %v188 = vadd.f32 0.0, %v187
  %v189 = vpop.f32.mrf.mxu0
  %v190 = vadd.f32 0.0, %v189
  %191 = vmatmul.bf16.gmra.mxu0 %v115
  %v192 = vpop.f32.mrf.mxu0
  %v193 = vadd.f32 0.0, %v192
  %v194 = vpop.f32.mrf.mxu0
  %v195 = vadd.f32 0.0, %v194
  %196 = vmatmul.bf16.gmra.mxu0 %v116
  %v197 = vpop.f32.mrf.mxu0
  %v198 = vadd.f32 0.0, %v197
  %v199 = vpop.f32.mrf.mxu0
  %v200 = vadd.f32 0.0, %v199
  %201 = vmatmul.bf16.gmra.mxu0 %v117
  %v202 = vpop.f32.mrf.mxu0
  %v203 = vadd.f32 0.0, %v202
  %v204 = vpop.f32.mrf.mxu0
  %v205 = vadd.f32 0.0, %v204
  %206 = vmatmul.bf16.gmra.mxu0 %v118
  %v207 = vpop.f32.mrf.mxu0
  %v208 = vadd.f32 0.0, %v207
  %v209 = vpop.f32.mrf.mxu0
  %v210 = vadd.f32 0.0, %v209
  %211 = vmatmul.bf16.gmra.mxu0 %v119
  %v212 = vpop.f32.mrf.mxu0
  %v213 = vadd.f32 0.0, %v212
  %v214 = vpop.f32.mrf.mxu0
  %v215 = vadd.f32 0.0, %v214
  %216 = vmatmul.bf16.gmra.mxu0 %v120
  %v217 = vpop.f32.mrf.mxu0
  %v218 = vadd.f32 0.0, %v217
  %v219 = vpop.f32.mrf.mxu0
  %v220 = vadd.f32 0.0, %v219
  %221 = vmatmul.bf16.gmra.mxu0 %v121
  %v222 = vpop.f32.mrf.mxu0
  %v223 = vadd.f32 0.0, %v222
  %v224 = vpop.f32.mrf.mxu0
  %v225 = vadd.f32 0.0, %v224
  %226 = vdwg.mxu0
  %v227 = vadd.f32 %v34, %v188
  %v228 = vadd.f32 %v35, %v190
  %v229 = vadd.f32 %v36, %v193
  %v230 = vadd.f32 %v37, %v195
  %v231 = vadd.f32 %v38, %v198
  %v232 = vadd.f32 %v39, %v200
  %v233 = vadd.f32 %v40, %v203
  %v234 = vadd.f32 %v41, %v205
  %v235 = vadd.f32 %v42, %v208
  %v236 = vadd.f32 %v43, %v210
  %v237 = vadd.f32 %v44, %v213
  %v238 = vadd.f32 %v45, %v215
  %v239 = vadd.f32 %v46, %v218
  %v240 = vadd.f32 %v47, %v220
  %v241 = vadd.f32 %v48, %v223
  %v242 = vadd.f32 %v49, %v225
  %243 = vst [vmem:[#allocation2] sm:$0xff] %v227
  %244 = vst [vmem:[#allocation2 + $0x8] sm:$0xff] %v228
  %245 = vst [vmem:[#allocation2 + $0x10] sm:$0xff] %v229
  %246 = vst [vmem:[#allocation2 + $0x18] sm:$0xff] %v230
  %247 = vst [vmem:[#allocation2 + $0x20] sm:$0xff] %v231
  %248 = vst [vmem:[#allocation2 + $0x28] sm:$0xff] %v232
  %249 = vst [vmem:[#allocation2 + $0x30] sm:$0xff] %v233
  %250 = vst [vmem:[#allocation2 + $0x38] sm:$0xff] %v234
  %251 = vst [vmem:[#allocation2 + $0x40] sm:$0xff] %v235
  %252 = vst [vmem:[#allocation2 + $0x48] sm:$0xff] %v236
  %253 = vst [vmem:[#allocation2 + $0x50] sm:$0xff] %v237
  %254 = vst [vmem:[#allocation2 + $0x58] sm:$0xff] %v238
  %255 = vst [vmem:[#allocation2 + $0x60] sm:$0xff] %v239
  %256 = vst [vmem:[#allocation2 + $0x68] sm:$0xff] %v240
  %257 = vst [vmem:[#allocation2 + $0x70] sm:$0xff] %v241
  %258 = vst [vmem:[#allocation2 + $0x78] sm:$0xff] %v242
  // Predicated region
  $region14: #{simple_block_forward.5} parent=0 // pred_check
    %p259 = pneg %p14
  $region15: #{simple_block_forward.5} parent=0 // pred_check_branch
    %261 = sbr.rel (%p259) target = $region17
  $region16: #{simple_block_forward.5} parent=0 // pred_region
    %v262 = vld [vmem:[#allocation2] sm:$0xff]
    %v263 = vld [vmem:[#allocation2 + $0x8] sm:$0xff]
    %v264 = vld [vmem:[#allocation2 + $0x10] sm:$0xff]
    %v265 = vld [vmem:[#allocation2 + $0x18] sm:$0xff]
    %v266 = vld [vmem:[#allocation2 + $0x20] sm:$0xff]
    %v267 = vld [vmem:[#allocation2 + $0x28] sm:$0xff]
    %v268 = vld [vmem:[#allocation2 + $0x30] sm:$0xff]
    %v269 = vld [vmem:[#allocation2 + $0x38] sm:$0xff]
    %v270 = vld [vmem:[#allocation2 + $0x40] sm:$0xff]
    %v271 = vld [vmem:[#allocation2 + $0x48] sm:$0xff]
    %v272 = vld [vmem:[#allocation2 + $0x50] sm:$0xff]
    %v273 = vld [vmem:[#allocation2 + $0x58] sm:$0xff]
    %v274 = vld [vmem:[#allocation2 + $0x60] sm:$0xff]
    %v275 = vld [vmem:[#allocation2 + $0x68] sm:$0xff]
    %v276 = vld [vmem:[#allocation2 + $0x70] sm:$0xff]
    %v277 = vld [vmem:[#allocation2 + $0x78] sm:$0xff]
    %v278 = vpack.c.bf16 %v262, %v262
    %v279 = vpack.c.bf16 %v263, %v263
    %v280 = vpack.c.bf16 %v264, %v264
    %v281 = vpack.c.bf16 %v265, %v265
    %v282 = vpack.c.bf16 %v266, %v266
    %v283 = vpack.c.bf16 %v267, %v267
    %v284 = vpack.c.bf16 %v268, %v268
    %v285 = vpack.c.bf16 %v269, %v269
    %v286 = vpack.c.bf16 %v270, %v270
    %v287 = vpack.c.bf16 %v271, %v271
    %v288 = vpack.c.bf16 %v272, %v272
    %v289 = vpack.c.bf16 %v273, %v273
    %v290 = vpack.c.bf16 %v274, %v274
    %v291 = vpack.c.bf16 %v275, %v275
    %v292 = vpack.c.bf16 %v276, %v276
    %v293 = vpack.c.bf16 %v277, %v277
    %294 = vst [vmem:[%s2] sm:$0xf] %v278
    %295 = vst [vmem:[%s2 + $0x4] sm:$0xf] %v279
    %296 = vst [vmem:[%s2 + $0x8] sm:$0xf] %v280
    %297 = vst [vmem:[%s2 + $0xc] sm:$0xf] %v281
    %298 = vst [vmem:[%s2 + $0x10] sm:$0xf] %v282
    %299 = vst [vmem:[%s2 + $0x14] sm:$0xf] %v283
    %300 = vst [vmem:[%s2 + $0x18] sm:$0xf] %v284
    %301 = vst [vmem:[%s2 + $0x1c] sm:$0xf] %v285
    %302 = vst [vmem:[%s2 + $0x20] sm:$0xf] %v286
    %303 = vst [vmem:[%s2 + $0x24] sm:$0xf] %v287
    %304 = vst [vmem:[%s2 + $0x28] sm:$0xf] %v288
    %305 = vst [vmem:[%s2 + $0x2c] sm:$0xf] %v289
    %306 = vst [vmem:[%s2 + $0x30] sm:$0xf] %v290
    %307 = vst [vmem:[%s2 + $0x34] sm:$0xf] %v291
    %308 = vst [vmem:[%s2 + $0x38] sm:$0xf] %v292
    %309 = vst [vmem:[%s2 + $0x3c] sm:$0xf] %v293
    %v310 = vadd.f32 %v262, %v263
    %v311 = vadd.f32 %v310, %v264
    %v312 = vadd.f32 %v311, %v265
    %v313 = vadd.f32 %v312, %v266
    %v314 = vadd.f32 %v313, %v267
    %v315 = vadd.f32 %v314, %v268
    %v316 = vadd.f32 %v315, %v269
    %v317 = vadd.f32 %v316, %v270
    %v318 = vadd.f32 %v317, %v271
    %v319 = vadd.f32 %v318, %v272
    %v320 = vadd.f32 %v319, %v273
    %v321 = vadd.f32 %v320, %v274
    %v322 = vadd.f32 %v321, %v275
    %v323 = vadd.f32 %v322, %v276
    %v324 = vadd.f32 %v323, %v277
    %v325 = vrot.slane %v324, 4
    %v326 = vadd.f32 %v324, %v325
    %v327 = vrot.slane %v326, 2
    %v328 = vadd.f32 %v326, %v327
    %v329 = vrot.slane %v328, 1
    %v330 = vadd.f32 %v328, %v329
    %v331 = vmul.f32 %v262, %v262
    %v332 = vmul.f32 %v263, %v263
    %v333 = vmul.f32 %v264, %v264
    %v334 = vmul.f32 %v265, %v265
    %v335 = vmul.f32 %v266, %v266
    %v336 = vmul.f32 %v267, %v267
    %v337 = vmul.f32 %v268, %v268
    %v338 = vmul.f32 %v269, %v269
    %v339 = vmul.f32 %v270, %v270
    %v340 = vmul.f32 %v271, %v271
    %v341 = vmul.f32 %v272, %v272
    %v342 = vmul.f32 %v273, %v273
    %v343 = vmul.f32 %v274, %v274
    %v344 = vmul.f32 %v275, %v275
    %v345 = vmul.f32 %v276, %v276
    %v346 = vmul.f32 %v277, %v277
    %v347 = vadd.f32 %v331, %v332
    %v348 = vadd.f32 %v347, %v333
    %v349 = vadd.f32 %v348, %v334
    %v350 = vadd.f32 %v349, %v335
    %v351 = vadd.f32 %v350, %v336
    %v352 = vadd.f32 %v351, %v337
    %v353 = vadd.f32 %v352, %v338
    %v354 = vadd.f32 %v353, %v339
    %v355 = vadd.f32 %v354, %v340
    %v356 = vadd.f32 %v355, %v341
    %v357 = vadd.f32 %v356, %v342
    %v358 = vadd.f32 %v357, %v343
    %v359 = vadd.f32 %v358, %v344
    %v360 = vadd.f32 %v359, %v345
    %v361 = vadd.f32 %v360, %v346
    %v362 = vrot.slane %v361, 4
    %v363 = vadd.f32 %v361, %v362
    %v364 = vrot.slane %v363, 2
    %v365 = vadd.f32 %v363, %v364
    %v366 = vrot.slane %v365, 1
    %v367 = vadd.f32 %v365, %v366
    %368 = vst [vmem:[%s3] sm:$0xff] %v330
    %369 = vst [vmem:[%s4] sm:$0xff] %v367
  $region17: #{simple_block_forward.5} parent=0 // pred_fallthru
    _
  // Predicated region
  $region18: #{simple_block_forward.5} parent=0 // pred_check
    _
  $region19: #{simple_block_forward.5} parent=0 // pred_check_branch
    %371 = sbr.rel (0) target = $region21
  $region20: #{simple_block_forward.5} parent=0 // pred_region
    _
  $region21: #{simple_block_forward.5} parent=0 // pred_fallthru
    _
  // Predicated region
  $region22: #{simple_block_forward.5} parent=0 // pred_check
    _
  $region23: #{simple_block_forward.5} parent=0 // pred_check_branch
    %373 = sbr.rel (0) target = $region25
  $region24: #{simple_block_forward.5} parent=0 // pred_region
    _
  $region25: #{simple_block_forward.5} parent=0 // pred_fallthru
    _
  // Predicated region
  $region26: #{simple_block_forward.5} parent=0 // pred_check
    _
  $region27: #{simple_block_forward.5} parent=0 // pred_check_branch
    %375 = sbr.rel (0) target = $region29
  $region28: #{simple_block_forward.5} parent=0 // pred_region
    _
  $region29: #{simple_block_forward.5} parent=0 // pred_fallthru
    _
  // Predicated region
  $region30: #{simple_block_forward.5} parent=0 // pred_check
    _
  $region31: #{simple_block_forward.5} parent=0 // pred_check_branch
    %377 = sbr.rel (0) target = $region33
  $region32: #{simple_block_forward.5} parent=0 // pred_region
    _
  $region33: #{simple_block_forward.5} parent=0 // pred_fallthru
    _
  // Predicated region
  $region34: #{simple_block_forward.5} parent=0 // pred_check
    _
  $region35: #{simple_block_forward.5} parent=0 // pred_check_branch
    %379 = sbr.rel (0) target = $region37
  $region36: #{simple_block_forward.5} parent=0 // pred_region
    _
  $region37: #{simple_block_forward.5} parent=0 // pred_fallthru
    _
  // Predicated region
  $region38: #{simple_block_forward.5} parent=0 // pred_check
    _
  $region39: #{simple_block_forward.5} parent=0 // pred_check_branch
    %381 = sbr.rel (0) target = $region41
  $region40: #{simple_block_forward.5} parent=0 // pred_region
    _
  $region41: #{simple_block_forward.5} parent=0 // pred_fallthru
    _

// kernel: simple_block_forward.9
$region0: #{simple_block_forward.9}
  #allocation0 [shape = 'u32[]', space=smem, size = 0x4, offset = 0x4, fixed_abs, tag = 'smem constant byte address 0x4 - core index']
  #allocation1 [shape = 'u32[72,128]{1,0:T(1,128)}', space=vmem, size = 0x9000, scoped, tag = 'internal scratch']
  %s0 = inlined_call_operand.vmem [shape: bf16[128,128], index: 0, kind: input, shape index: {}]
  %s1 = inlined_call_operand.vmem [shape: bf16[128,128], index: 1, kind: input, shape index: {}]
  %s2 = inlined_call_operand.vmem [shape: f32[1,128], index: 2, kind: input, shape index: {}]
  %s3 = inlined_call_operand.vmem [shape: f32[1,128], index: 3, kind: input, shape index: {}]
  %s4 = inlined_call_operand.vmem [shape: f32[1,128], index: 4, kind: input, shape index: {}]
  %s5 = inlined_call_operand.vmem [shape: f32[1,128], index: 5, kind: input, shape index: {}]
  %s6 = inlined_call_operand.vmem [shape: f32[128,128], index: 6, kind: output, shape index: {}]
  %s7 = sld [smem:[#allocation0]]
  $region34: #{simple_block_forward.9} parent=0
    _
  %s9 = ssub.s32 1, %s7
  %s10 = scalar_select 0, %s9, %s7
  // Predicated region
  $region2: #{simple_block_forward.9} parent=0 // pred_check
    _
  $region3: #{simple_block_forward.9} parent=0 // pred_check_branch
    %12 = sbr.rel (0) target = $region5
  $region4: #{simple_block_forward.9} parent=0 // pred_region
    _
  $region5: #{simple_block_forward.9} parent=0 // pred_fallthru
    _
  // Predicated region
  $region6: #{simple_block_forward.9} parent=0 // pred_check
    _
  $region7: #{simple_block_forward.9} parent=0 // pred_check_branch
    %14 = sbr.rel (0) target = $region9
  $region8: #{simple_block_forward.9} parent=0 // pred_region
    _
  $region9: #{simple_block_forward.9} parent=0 // pred_fallthru
    _
  // Predicated region
  $region10: #{simple_block_forward.9} parent=0 // pred_check
    _
  $region11: #{simple_block_forward.9} parent=0 // pred_check_branch
    %16 = sbr.rel (0) target = $region13
  $region12: #{simple_block_forward.9} parent=0 // pred_region
    _
  $region13: #{simple_block_forward.9} parent=0 // pred_fallthru
    _
  // Predicated region
  $region14: #{simple_block_forward.9} parent=0 // pred_check
    _
  $region15: #{simple_block_forward.9} parent=0 // pred_check_branch
    %18 = sbr.rel (0) target = $region17
  $region16: #{simple_block_forward.9} parent=0 // pred_region
    _
  $region17: #{simple_block_forward.9} parent=0 // pred_fallthru
    _
  // Predicated region
  $region18: #{simple_block_forward.9} parent=0 // pred_check
    _
  $region19: #{simple_block_forward.9} parent=0 // pred_check_branch
    %20 = sbr.rel (0) target = $region21
  $region20: #{simple_block_forward.9} parent=0 // pred_region
    _
  $region21: #{simple_block_forward.9} parent=0 // pred_fallthru
    _
  // Predicated region
  $region22: #{simple_block_forward.9} parent=0 // pred_check
    _
  $region23: #{simple_block_forward.9} parent=0 // pred_check_branch
    %22 = sbr.rel (0) target = $region25
  $region24: #{simple_block_forward.9} parent=0 // pred_region
    _
  $region25: #{simple_block_forward.9} parent=0 // pred_fallthru
    _
  %v23 = vld [vmem:[%s0] sm:$0xf]
  %v24 = vld [vmem:[%s0 + $0x4] sm:$0xf]
  %v25 = vld [vmem:[%s0 + $0x8] sm:$0xf]
  %v26 = vld [vmem:[%s0 + $0xc] sm:$0xf]
  %v27 = vld [vmem:[%s0 + $0x10] sm:$0xf]
  %v28 = vld [vmem:[%s0 + $0x14] sm:$0xf]
  %v29 = vld [vmem:[%s0 + $0x18] sm:$0xf]
  %v30 = vld [vmem:[%s0 + $0x1c] sm:$0xf]
  %v31 = vld [vmem:[%s0 + $0x20] sm:$0xf]
  %v32 = vld [vmem:[%s0 + $0x24] sm:$0xf]
  %v33 = vld [vmem:[%s0 + $0x28] sm:$0xf]
  %v34 = vld [vmem:[%s0 + $0x2c] sm:$0xf]
  %v35 = vld [vmem:[%s0 + $0x30] sm:$0xf]
  %v36 = vld [vmem:[%s0 + $0x34] sm:$0xf]
  %v37 = vld [vmem:[%s0 + $0x38] sm:$0xf]
  %v38 = vld [vmem:[%s0 + $0x3c] sm:$0xf]
  %v39 = vunpack.c.l.bf16 %v23
  %v40 = vunpack.c.l.bf16 %v24
  %v41 = vunpack.c.l.bf16 %v25
  %v42 = vunpack.c.l.bf16 %v26
  %v43 = vunpack.c.l.bf16 %v27
  %v44 = vunpack.c.l.bf16 %v28
  %v45 = vunpack.c.l.bf16 %v29
  %v46 = vunpack.c.l.bf16 %v30
  %v47 = vunpack.c.l.bf16 %v31
  %v48 = vunpack.c.l.bf16 %v32
  %v49 = vunpack.c.l.bf16 %v33
  %v50 = vunpack.c.l.bf16 %v34
  %v51 = vunpack.c.l.bf16 %v35
  %v52 = vunpack.c.l.bf16 %v36
  %v53 = vunpack.c.l.bf16 %v37
  %v54 = vunpack.c.l.bf16 %v38
  %v55 = vld [vmem:[%s2] sm:$0x1]
  %v57 = vperm.slane %v55, 0
  %v59 = vmul.f32 %v39, %v57
  %v60 = vmul.f32 %v40, %v57
  %v61 = vmul.f32 %v41, %v57
  %v62 = vmul.f32 %v42, %v57
  %v63 = vmul.f32 %v43, %v57
  %v64 = vmul.f32 %v44, %v57
  %v65 = vmul.f32 %v45, %v57
  %v66 = vmul.f32 %v46, %v57
  %v67 = vmul.f32 %v47, %v57
  %v68 = vmul.f32 %v48, %v57
  %v69 = vmul.f32 %v49, %v57
  %v70 = vmul.f32 %v50, %v57
  %v71 = vmul.f32 %v51, %v57
  %v72 = vmul.f32 %v52, %v57
  %v73 = vmul.f32 %v53, %v57
  %v74 = vmul.f32 %v54, %v57
  %v75 = vld [vmem:[%s3] sm:$0x1]
  %v77 = vperm.slane %v75, 0
  %v79 = vadd.f32 %v59, %v77
  %v80 = vadd.f32 %v60, %v77
  %v81 = vadd.f32 %v61, %v77
  %v82 = vadd.f32 %v62, %v77
  %v83 = vadd.f32 %v63, %v77
  %v84 = vadd.f32 %v64, %v77
  %v85 = vadd.f32 %v65, %v77
  %v86 = vadd.f32 %v66, %v77
  %v87 = vadd.f32 %v67, %v77
  %v88 = vadd.f32 %v68, %v77
  %v89 = vadd.f32 %v69, %v77
  %v90 = vadd.f32 %v70, %v77
  %v91 = vadd.f32 %v71, %v77
  %v92 = vadd.f32 %v72, %v77
  %v93 = vadd.f32 %v73, %v77
  %v94 = vadd.f32 %v74, %v77
  %v95 = vld [vmem:[%s1] sm:$0xf]
  %v96 = vld [vmem:[%s1 + $0x4] sm:$0xf]
  %v97 = vld [vmem:[%s1 + $0x8] sm:$0xf]
  %v98 = vld [vmem:[%s1 + $0xc] sm:$0xf]
  %v99 = vld [vmem:[%s1 + $0x10] sm:$0xf]
  %v100 = vld [vmem:[%s1 + $0x14] sm:$0xf]
  %v101 = vld [vmem:[%s1 + $0x18] sm:$0xf]
  %v102 = vld [vmem:[%s1 + $0x1c] sm:$0xf]
  %v103 = vld [vmem:[%s1 + $0x20] sm:$0xf]
  %v104 = vld [vmem:[%s1 + $0x24] sm:$0xf]
  %v105 = vld [vmem:[%s1 + $0x28] sm:$0xf]
  %v106 = vld [vmem:[%s1 + $0x2c] sm:$0xf]
  %v107 = vld [vmem:[%s1 + $0x30] sm:$0xf]
  %v108 = vld [vmem:[%s1 + $0x34] sm:$0xf]
  %v109 = vld [vmem:[%s1 + $0x38] sm:$0xf]
  %v110 = vld [vmem:[%s1 + $0x3c] sm:$0xf]
  %v111 = vunpack.c.l.bf16 %v95
  %v112 = vunpack.c.l.bf16 %v96
  %v113 = vunpack.c.l.bf16 %v97
  %v114 = vunpack.c.l.bf16 %v98
  %v115 = vunpack.c.l.bf16 %v99
  %v116 = vunpack.c.l.bf16 %v100
  %v117 = vunpack.c.l.bf16 %v101
  %v118 = vunpack.c.l.bf16 %v102
  %v119 = vunpack.c.l.bf16 %v103
  %v120 = vunpack.c.l.bf16 %v104
  %v121 = vunpack.c.l.bf16 %v105
  %v122 = vunpack.c.l.bf16 %v106
  %v123 = vunpack.c.l.bf16 %v107
  %v124 = vunpack.c.l.bf16 %v108
  %v125 = vunpack.c.l.bf16 %v109
  %v126 = vunpack.c.l.bf16 %v110
  %v127 = vld [vmem:[%s4] sm:$0x1]
  %v129 = vperm.slane %v127, 0
  %v131 = vmul.f32 %v111, %v129
  %v132 = vmul.f32 %v112, %v129
  %v133 = vmul.f32 %v113, %v129
  %v134 = vmul.f32 %v114, %v129
  %v135 = vmul.f32 %v115, %v129
  %v136 = vmul.f32 %v116, %v129
  %v137 = vmul.f32 %v117, %v129
  %v138 = vmul.f32 %v118, %v129
  %v139 = vmul.f32 %v119, %v129
  %v140 = vmul.f32 %v120, %v129
  %v141 = vmul.f32 %v121, %v129
  %v142 = vmul.f32 %v122, %v129
  %v143 = vmul.f32 %v123, %v129
  %v144 = vmul.f32 %v124, %v129
  %v145 = vmul.f32 %v125, %v129
  %v146 = vmul.f32 %v126, %v129
  %v147 = vld [vmem:[%s5] sm:$0x1]
  %v149 = vperm.slane %v147, 0
  %v151 = vadd.f32 %v131, %v149
  %v152 = vadd.f32 %v132, %v149
  %v153 = vadd.f32 %v133, %v149
  %v154 = vadd.f32 %v134, %v149
  %v155 = vadd.f32 %v135, %v149
  %v156 = vadd.f32 %v136, %v149
  %v157 = vadd.f32 %v137, %v149
  %v158 = vadd.f32 %v138, %v149
  %v159 = vadd.f32 %v139, %v149
  %v160 = vadd.f32 %v140, %v149
  %v161 = vadd.f32 %v141, %v149
  %v162 = vadd.f32 %v142, %v149
  %v163 = vadd.f32 %v143, %v149
  %v164 = vadd.f32 %v144, %v149
  %v165 = vadd.f32 %v145, %v149
  %v166 = vadd.f32 %v146, %v149
  %v167 = vadd.f32 %v79, %v151
  %v168 = vadd.f32 %v80, %v152
  %v169 = vadd.f32 %v81, %v153
  %v170 = vadd.f32 %v82, %v154
  %v171 = vadd.f32 %v83, %v155
  %v172 = vadd.f32 %v84, %v156
  %v173 = vadd.f32 %v85, %v157
  %v174 = vadd.f32 %v86, %v158
  %v175 = vadd.f32 %v87, %v159
  %v176 = vadd.f32 %v88, %v160
  %v177 = vadd.f32 %v89, %v161
  %v178 = vadd.f32 %v90, %v162
  %v179 = vadd.f32 %v91, %v163
  %v180 = vadd.f32 %v92, %v164
  %v181 = vadd.f32 %v93, %v165
  %v182 = vadd.f32 %v94, %v166
  %v183 = vmax.f32 %v167, 0.0
  %v184 = vmax.f32 %v168, 0.0
  %v185 = vmax.f32 %v169, 0.0
  %v186 = vmax.f32 %v170, 0.0
  %v187 = vmax.f32 %v171, 0.0
  %v188 = vmax.f32 %v172, 0.0
  %v189 = vmax.f32 %v173, 0.0
  %v190 = vmax.f32 %v174, 0.0
  %v191 = vmax.f32 %v175, 0.0
  %v192 = vmax.f32 %v176, 0.0
  %v193 = vmax.f32 %v177, 0.0
  %v194 = vmax.f32 %v178, 0.0
  %v195 = vmax.f32 %v179, 0.0
  %v196 = vmax.f32 %v180, 0.0
  %v197 = vmax.f32 %v181, 0.0
  %v198 = vmax.f32 %v182, 0.0
  %199 = vst [vmem:[%s6] sm:$0xff] %v183
  %200 = vst [vmem:[%s6 + $0x8] sm:$0xff] %v184
  %201 = vst [vmem:[%s6 + $0x10] sm:$0xff] %v185
  %202 = vst [vmem:[%s6 + $0x18] sm:$0xff] %v186
  %203 = vst [vmem:[%s6 + $0x20] sm:$0xff] %v187
  %204 = vst [vmem:[%s6 + $0x28] sm:$0xff] %v188
  %205 = vst [vmem:[%s6 + $0x30] sm:$0xff] %v189
  %206 = vst [vmem:[%s6 + $0x38] sm:$0xff] %v190
  %207 = vst [vmem:[%s6 + $0x40] sm:$0xff] %v191
  %208 = vst [vmem:[%s6 + $0x48] sm:$0xff] %v192
  %209 = vst [vmem:[%s6 + $0x50] sm:$0xff] %v193
  %210 = vst [vmem:[%s6 + $0x58] sm:$0xff] %v194
  %211 = vst [vmem:[%s6 + $0x60] sm:$0xff] %v195
  %212 = vst [vmem:[%s6 + $0x68] sm:$0xff] %v196
  %213 = vst [vmem:[%s6 + $0x70] sm:$0xff] %v197
  %214 = vst [vmem:[%s6 + $0x78] sm:$0xff] %v198
  // Predicated region
  $region26: #{simple_block_forward.9} parent=0 // pred_check
    _
  $region27: #{simple_block_forward.9} parent=0 // pred_check_branch
    %216 = sbr.rel (0) target = $region29
  $region28: #{simple_block_forward.9} parent=0 // pred_region
    _
  $region29: #{simple_block_forward.9} parent=0 // pred_fallthru
    _
  // Predicated region
  $region30: #{simple_block_forward.9} parent=0 // pred_check
    _
  $region31: #{simple_block_forward.9} parent=0 // pred_check_branch
    %218 = sbr.rel (0) target = $region33
  $region32: #{simple_block_forward.9} parent=0 // pred_region
    _
  $region33: #{simple_block_forward.9} parent=0 // pred_fallthru
    _

</llo_original>
